<compile_context>
chip_gen: v6e
topology: v6e:2x2x1
jax: 0.10.0
libtpu: 0.0.40
codegen_flags: <defaults>
</compile_context>

<pallas_src>
import jax
import jax.numpy as jnp
import numpy as np
from jax.experimental import pallas as pl
from jax.experimental.pallas import tpu as pltpu

HIDDEN = 16        # fc1 output features
NUM_CLASSES = 7    # fc2 output features
LANE_PAD = 128     # lane-dense output width (padded in-kernel, sliced outside)


# ---------------------------------------------------------------------------
# Single fused Pallas kernel: fc1 + ReLU + fc2 + masked softmax
# ---------------------------------------------------------------------------
def _classifier_kernel(x_ref, w1_ref, b1_ref, w2_ref, b2_ref, o_ref):
    # fc1 + ReLU (MXU matmul, f32 accumulate)
    h = jnp.dot(x_ref[...], w1_ref[...], preferred_element_type=jnp.float32)
    h = jnp.maximum(h + b1_ref[...], 0.0)

    # fc2 into a 128-lane padded slab (padded weight columns / bias are zero)
    logits = jnp.dot(h, w2_ref[...], preferred_element_type=jnp.float32)
    logits = logits + b2_ref[...]

    # Mask the padded lanes out of the softmax.
    col = jax.lax.broadcasted_iota(jnp.int32, logits.shape, 1)
    logits = jnp.where(col < NUM_CLASSES, logits, -1e30)

    # Numerically-stable softmax over the class (lane) axis.
    m = jnp.max(logits, axis=1, keepdims=True)
    e = jnp.exp(logits - m)
    denom = jnp.sum(e, axis=1, keepdims=True)
    o_ref[...] = e / denom


def _vmem_spec():
    return pl.BlockSpec(memory_space=pltpu.MemorySpace.VMEM)


def classifier_forward(params, x):
    """x: (N, encoded_space_dim) f32 -> (N, NUM_CLASSES) f32 softmax probs."""
    N = x.shape[0]
    y_pad = pl.pallas_call(
        _classifier_kernel,
        out_shape=jax.ShapeDtypeStruct((N, LANE_PAD), jnp.float32),
        in_specs=[_vmem_spec()] * 5,
        out_specs=_vmem_spec(),
    )(x, params["fc1_w"], params["fc1_b"], params["fc2_w_pad"], params["fc2_b_pad"])
    return y_pad[:, :NUM_CLASSES]


# ---------------------------------------------------------------------------
# Parameters (PyTorch nn.Linear default init) + pure-JAX reference
# ---------------------------------------------------------------------------
def init_classifier_params(key, encoded_space_dim):
    k1, k2, k3, k4 = jax.random.split(key, 4)

    def uni(k, shape, bound):
        return jax.random.uniform(k, shape, jnp.float32, -bound, bound)

    bnd1 = 1.0 / np.sqrt(encoded_space_dim)
    bnd2 = 1.0 / np.sqrt(HIDDEN)
    fc1_w = uni(k1, (encoded_space_dim, HIDDEN), bnd1)
    fc1_b = uni(k2, (1, HIDDEN), bnd1)
    fc2_w = uni(k3, (HIDDEN, NUM_CLASSES), bnd2)
    fc2_b = uni(k4, (1, NUM_CLASSES), bnd2)
    return {
        "fc1_w": fc1_w,
        "fc1_b": fc1_b,
        "fc2_w": fc2_w,   # unpadded (reference)
        "fc2_b": fc2_b,
        # Pre-padded once here so the forward pass has zero padding glue and
        # the kernel's final store is a full-width (128-lane) unmasked store.
        "fc2_w_pad": jnp.pad(fc2_w, ((0, 0), (0, LANE_PAD - NUM_CLASSES))),
        "fc2_b_pad": jnp.pad(fc2_b, ((0, 0), (0, LANE_PAD - NUM_CLASSES))),
    }


def classifier_forward_ref(params, x):
    h = jnp.maximum(x @ params["fc1_w"] + params["fc1_b"], 0.0)
    logits = h @ params["fc2_w"] + params["fc2_b"]
    return jax.nn.softmax(logits, axis=1)


if __name__ == "__main__":
    encoded_space_dim = 8
    batch = 2

    key = jax.random.PRNGKey(0)
    kp, kx = jax.random.split(key)
    params = init_classifier_params(kp, encoded_space_dim)
    x = jax.random.normal(kx, (batch, encoded_space_dim), dtype=jnp.float32)

    out = jax.jit(classifier_forward)(params, x)
    out = jax.block_until_ready(out)
    assert out.shape == (batch, NUM_CLASSES), out.shape

    ref = classifier_forward_ref(params, x)
    np.testing.assert_allclose(np.asarray(out), np.asarray(ref), rtol=1e-4, atol=1e-6)
    np.testing.assert_allclose(np.asarray(out).sum(axis=1), np.ones(batch), rtol=1e-5)

    print("KERNEL_OK")
</pallas_src>

<mosaic_0001>
module attributes {stable_mosaic.version = 11 : i64} {
  func.func @_classifier_kernel(%arg0: memref<2x8xf32, #tpu.memory_space<vmem>>, %arg1: memref<8x16xf32, #tpu.memory_space<vmem>>, %arg2: memref<1x16xf32, #tpu.memory_space<vmem>>, %arg3: memref<16x128xf32, #tpu.memory_space<vmem>>, %arg4: memref<1x128xf32, #tpu.memory_space<vmem>>, %arg5: memref<2x128xf32, #tpu.memory_space<vmem>>) attributes {dimension_semantics = [], scalar_prefetch = 0 : i64, scratch_operands = 0 : i64, tpu.core_type = #tpu.core_type<tc>} {
    %c0 = arith.constant 0 : index
    %c0_0 = arith.constant 0 : index
    %0 = vector.load %arg0[%c0, %c0_0] : memref<2x8xf32, #tpu.memory_space<vmem>>, vector<2x8xf32>
    %c0_1 = arith.constant 0 : index
    %c0_2 = arith.constant 0 : index
    %1 = vector.load %arg1[%c0_1, %c0_2] : memref<8x16xf32, #tpu.memory_space<vmem>>, vector<8x16xf32>
    %cst = arith.constant dense<0.000000e+00> : vector<2x16xf32>
    %2 = tpu.matmul %0, %1, %cst {dimension_numbers = #tpu.dot_dimension_numbers<[1], [0], [0], [1], [0, 0, 1, 1], [], []>} : vector<2x8xf32>, vector<8x16xf32>, vector<2x16xf32> -> vector<2x16xf32>
    %c0_3 = arith.constant 0 : index
    %c0_4 = arith.constant 0 : index
    %3 = vector.load %arg2[%c0_3, %c0_4] : memref<1x16xf32, #tpu.memory_space<vmem>>, vector<1x16xf32>
    %4 = vector.broadcast %3 : vector<1x16xf32> to vector<2x16xf32>
    %5 = arith.addf %2, %4 : vector<2x16xf32>
    %cst_5 = arith.constant 0.000000e+00 : f32
    %6 = vector.broadcast %cst_5 : f32 to vector<2x16xf32>
    %7 = arith.maximumf %5, %6 : vector<2x16xf32>
    %c0_6 = arith.constant 0 : index
    %c0_7 = arith.constant 0 : index
    %8 = vector.load %arg3[%c0_6, %c0_7] : memref<16x128xf32, #tpu.memory_space<vmem>>, vector<16x128xf32>
    %cst_8 = arith.constant dense<0.000000e+00> : vector<2x128xf32>
    %9 = tpu.matmul %7, %8, %cst_8 {dimension_numbers = #tpu.dot_dimension_numbers<[1], [0], [0], [1], [0, 0, 1, 1], [], []>} : vector<2x16xf32>, vector<16x128xf32>, vector<2x128xf32> -> vector<2x128xf32>
    %c0_9 = arith.constant 0 : index
    %c0_10 = arith.constant 0 : index
    %10 = vector.load %arg4[%c0_9, %c0_10] : memref<1x128xf32, #tpu.memory_space<vmem>>, vector<1x128xf32>
    %11 = vector.broadcast %10 : vector<1x128xf32> to vector<2x128xf32>
    %12 = arith.addf %9, %11 : vector<2x128xf32>
    %13 = tpu.iota {dimensions = array<i32: 1>} : vector<2x128xi32>
    %c7_i32 = arith.constant 7 : i32
    %14 = vector.broadcast %c7_i32 : i32 to vector<2x128xi32>
    %15 = arith.cmpi slt, %13, %14 : vector<2x128xi32>
    %cst_11 = arith.constant -1.000000e+30 : f32
    %16 = vector.broadcast %cst_11 : f32 to vector<2x128xf32>
    %17 = arith.select %15, %12, %16 : vector<2x128xi1>, vector<2x128xf32>
    %cst_12 = arith.constant dense<0xFF800000> : vector<2xf32>
    %18 = vector.multi_reduction <maximumf>, %17, %cst_12 [1] : vector<2x128xf32> to vector<2xf32>
    %19 = vector.shape_cast %18 : vector<2xf32> to vector<2x1xf32>
    %20 = vector.broadcast %19 : vector<2x1xf32> to vector<2x128xf32>
    %21 = arith.subf %17, %20 : vector<2x128xf32>
    %22 = math.exp %21 : vector<2x128xf32>
    %cst_13 = arith.constant dense<0.000000e+00> : vector<2xf32>
    %23 = vector.multi_reduction <add>, %22, %cst_13 [1] : vector<2x128xf32> to vector<2xf32>
    %24 = vector.shape_cast %23 : vector<2xf32> to vector<2x1xf32>
    %25 = vector.broadcast %24 : vector<2x1xf32> to vector<2x128xf32>
    %26 = arith.divf %22, %25 : vector<2x128xf32>
    %c0_14 = arith.constant 0 : index
    %c0_15 = arith.constant 0 : index
    %27 = vector.load %arg5[%c0_14, %c0_15] : memref<2x128xf32, #tpu.memory_space<vmem>>, vector<2x128xf32>
    tpu.vector_store %arg5[%c0_14, %c0_15], %26 {strides = array<i32>} : memref<2x128xf32, #tpu.memory_space<vmem>>, vector<2x128xf32>,
    return
  }
}

</mosaic_0001>

<llo_original>
// kernel: classifier_forward.1
$region0: #{classifier_forward.1}
  #allocation0 [shape = 'u32[]', space=smem, size = 0x4, offset = 0x4, fixed_abs, tag = 'smem constant byte address 0x4 - core index']
  #allocation1 [shape = 'u32[144,128]{1,0:T(1,128)}', space=vmem, size = 0x12000, scoped, tag = 'internal scratch']
  %s0 = inlined_call_operand.vmem [shape: f32[2,8], index: 0, kind: input, shape index: {}]
  %s1 = inlined_call_operand.hbm [shape: f32[8,16], index: 1, kind: input, shape index: {}]
  %s2 = inlined_call_operand.hbm [shape: f32[1,16], index: 2, kind: input, shape index: {}]
  %s3 = inlined_call_operand.hbm [shape: f32[16,128], index: 3, kind: input, shape index: {}]
  %s4 = inlined_call_operand.vmem [shape: f32[1,128], index: 4, kind: input, shape index: {}]
  %s5 = inlined_call_operand.hbm [shape: f32[2,128], index: 5, kind: output, shape index: {}]
  %s6 = sld [smem:[#allocation0]]
  $region42: #{classifier_forward.1} parent=0
    _
  %s8 = ssub.s32 1, %s6
  %s9 = scalar_select 0, %s8, %s6
  $region1: #{classifier_forward.1} parent=0
    #allocation2 [shape = 'u8[4096]{0}', space=vmem, size = 0x1000, scoped, tag = 'input window, operand 1, single buffered']
    #allocation3 [shape = 's32[1]{0}', space=sflag, size = 0x4, scoped, tag = 'scoped memory for classifier_forward.1']
    #allocation4 [shape = 's32[1]{0}', space=sflag, size = 0x4, scoped, tag = 'scoped memory for classifier_forward.1']
    #allocation5 [shape = 'u8[512]{0}', space=vmem, size = 0x400, scoped, tag = 'input window, operand 2, single buffered']
    #allocation6 [shape = 's32[1]{0}', space=sflag, size = 0x4, scoped, tag = 'scoped memory for classifier_forward.1']
    #allocation7 [shape = 'u8[8192]{0}', space=vmem, size = 0x2000, scoped, tag = 'input window, operand 3, single buffered']
    #allocation8 [shape = 'u8[1024]{0}', space=vmem, size = 0x400, scoped, tag = 'output window, operand 0, single buffered']
    %10 = vsyncpa [#allocation3], 0
    %11 = vsyncpa [#allocation6], 0
    %12 = vsyncpa [#allocation4], 0
    // Predicated region
    $region2: #{classifier_forward.1} parent=1 // pred_check
      _
    $region3: #{classifier_forward.1} parent=1 // pred_check_branch
      %14 = sbr.rel (0) target = $region5
    $region4: #{classifier_forward.1} parent=1 // pred_region
      _
    $region5: #{classifier_forward.1} parent=1 // pred_fallthru
      _
    // Predicated region
    $region6: #{classifier_forward.1} parent=1 // pred_check
      _
    $region7: #{classifier_forward.1} parent=1 // pred_check_branch
      %16 = sbr.rel (0) target = $region9
    $region8: #{classifier_forward.1} parent=1 // pred_region
      %s18 = ssub.s32 128, 128
      %19 = vsyncadd [#allocation3], %s18
      %s21 = sshll.u32 [#allocation2], 4
      %s22 = int_to_ptr.vmem [resolvable:$true] %s21
      %24 = dma.hbm_to_vmem [thread:$0]  %s1, 128, %s22, [#allocation3]
    $region9: #{classifier_forward.1} parent=1 // pred_fallthru
      _
    // Predicated region
    $region10: #{classifier_forward.1} parent=1 // pred_check
      _
    $region11: #{classifier_forward.1} parent=1 // pred_check_branch
      %26 = sbr.rel (0) target = $region13
    $region12: #{classifier_forward.1} parent=1 // pred_region
      %s28 = ssub.s32 16, 16
      %29 = vsyncadd [#allocation6], %s28
      %s31 = sshll.u32 [#allocation5], 4
      %s32 = int_to_ptr.vmem [resolvable:$true] %s31
      %34 = dma.hbm_to_vmem [thread:$0]  %s2, 16, %s32, [#allocation6]
    $region13: #{classifier_forward.1} parent=1 // pred_fallthru
      _
    // Predicated region
    $region14: #{classifier_forward.1} parent=1 // pred_check
      _
    $region15: #{classifier_forward.1} parent=1 // pred_check_branch
      %36 = sbr.rel (0) target = $region17
    $region16: #{classifier_forward.1} parent=1 // pred_region
      %s38 = ssub.s32 256, 256
      %39 = vsyncadd [#allocation6], %s38
      %s40 = sshll.u32 [#allocation7], 4
      %s41 = int_to_ptr.vmem [resolvable:$true] %s40
      %46 = dma.hbm_to_vmem [thread:$0]  %s3, 256, %s41, [#allocation6], 128, 128, 8
    $region17: #{classifier_forward.1} parent=1 // pred_fallthru
      _
    // Predicated region
    $region18: #{classifier_forward.1} parent=1 // pred_check
      _
    $region19: #{classifier_forward.1} parent=1 // pred_check_branch
      %48 = sbr.rel (0) target = $region21
    $region20: #{classifier_forward.1} parent=1 // pred_region
      _
    $region21: #{classifier_forward.1} parent=1 // pred_fallthru
      _
    // Predicated region
    $region22: #{classifier_forward.1} parent=1 // pred_check
      _
    $region23: #{classifier_forward.1} parent=1 // pred_check_branch
      %50 = sbr.rel (0) target = $region25
    $region24: #{classifier_forward.1} parent=1 // pred_region
      %51 = dma.done [#allocation3], 128
    $region25: #{classifier_forward.1} parent=1 // pred_fallthru
      _
    // Predicated region
    $region26: #{classifier_forward.1} parent=1 // pred_check
      _
    $region27: #{classifier_forward.1} parent=1 // pred_check_branch
      %53 = sbr.rel (0) target = $region29
    $region28: #{classifier_forward.1} parent=1 // pred_region
      %54 = dma.done [#allocation6], 16
    $region29: #{classifier_forward.1} parent=1 // pred_fallthru
      _
    // Predicated region
    $region30: #{classifier_forward.1} parent=1 // pred_check
      _
    $region31: #{classifier_forward.1} parent=1 // pred_check_branch
      %56 = sbr.rel (0) target = $region33
    $region32: #{classifier_forward.1} parent=1 // pred_region
      %57 = dma.done [#allocation6], 256
    $region33: #{classifier_forward.1} parent=1 // pred_fallthru
      _
    %v58 = vld [vmem:[%s0] sm:$0x3]
    %v59 = vld [vmem:[#allocation2] sm:$0xff]
    %v60 = vld [vmem:[#allocation5] sm:$0x1]
    %v62 = vlaneseq
    %v63 = vshrl.u32 %v62, 7
    %v64 = vsub.s32 0, %v63
    %v65 = vrot.slane %v60, %v64
    %vm67 = vcmask 64512
    %v69 = vsel %vm67, %v58, 0
    %71 = vmatprep.subr.mxu0 0.0
    %72 = vmatpush1.msra.mxu0 0.0
    %73 = vmatprep.subr.mxu0 0.0
    %74 = vmatpush1.msra.mxu0 0.0
    %75 = vmatprep.subr.mxu0 0.0
    %76 = vmatpush1.msra.mxu0 0.0
    %77 = vmatprep.subr.mxu0 0.0
    %78 = vmatpush1.msra.mxu0 0.0
    %79 = vmatprep.subr.mxu0 0.0
    %80 = vmatpush1.msra.mxu0 0.0
    %81 = vmatprep.subr.mxu0 0.0
    %82 = vmatpush1.msra.mxu0 0.0
    %83 = vmatprep.subr.mxu0 0.0
    %84 = vmatpush1.msra.mxu0 0.0
    %85 = vmatprep.subr.mxu0 0.0
    %86 = vmatpush1.msra.mxu0 0.0
    %87 = vmatprep.subr.mxu0 0.0
    %88 = vmatpush1.msra.mxu0 0.0
    %89 = vmatprep.subr.mxu0 0.0
    %90 = vmatpush1.msra.mxu0 0.0
    %91 = vmatprep.subr.mxu0 0.0
    %92 = vmatpush1.msra.mxu0 0.0
    %93 = vmatprep.subr.mxu0 0.0
    %94 = vmatpush1.msra.mxu0 0.0
    %95 = vmatprep.subr.mxu0 0.0
    %96 = vmatpush1.msra.mxu0 0.0
    %97 = vmatprep.subr.mxu0 0.0
    %98 = vmatpush1.msra.mxu0 0.0
    %99 = vmatprep.subr.mxu0 0.0
    %100 = vmatpush1.msra.mxu0 0.0
    %101 = vmatprep.subr.mxu0 0.0
    %102 = vmatpush1.msra.mxu0 %v59
    %103 = vmatprep.subr.mxu0 0.0
    %104 = vmatpush2.msra.mxu0 0.0
    %105 = vmatprep.subr.mxu0 0.0
    %106 = vmatpush2.msra.mxu0 0.0
    %107 = vmatprep.subr.mxu0 0.0
    %108 = vmatpush2.msra.mxu0 0.0
    %109 = vmatprep.subr.mxu0 0.0
    %110 = vmatpush2.msra.mxu0 0.0
    %111 = vmatprep.subr.mxu0 0.0
    %112 = vmatpush2.msra.mxu0 0.0
    %113 = vmatprep.subr.mxu0 0.0
    %114 = vmatpush2.msra.mxu0 0.0
    %115 = vmatprep.subr.mxu0 0.0
    %116 = vmatpush2.msra.mxu0 0.0
    %117 = vmatprep.subr.mxu0 0.0
    %118 = vmatpush2.msra.mxu0 0.0
    %119 = vmatprep.subr.mxu0 0.0
    %120 = vmatpush2.msra.mxu0 0.0
    %121 = vmatprep.subr.mxu0 0.0
    %122 = vmatpush2.msra.mxu0 0.0
    %123 = vmatprep.subr.mxu0 0.0
    %124 = vmatpush2.msra.mxu0 0.0
    %125 = vmatprep.subr.mxu0 0.0
    %126 = vmatpush2.msra.mxu0 0.0
    %127 = vmatprep.subr.mxu0 0.0
    %128 = vmatpush2.msra.mxu0 0.0
    %129 = vmatprep.subr.mxu0 0.0
    %130 = vmatpush2.msra.mxu0 0.0
    %131 = vmatprep.subr.mxu0 0.0
    %132 = vmatpush2.msra.mxu0 0.0
    %133 = vmatprep.subr.mxu0 0.0
    %134 = vmatpush2.msra.mxu0 0.0
    %135 = vmatprep.mubr.f32.mxu0 0.0
    %136 = vmatmul.mubr.f32.gmra.mxu0 %v69
    %v137 = vpop.f32.mrf.mxu0
    %v138 = vadd.f32 %v65, %v137
    %v139 = vpop.f32.mrf.mxu0
    %140 = vdwg.mxu0
    %v141 = vmax.f32 %v138, 0.0
    %v142 = vld [vmem:[#allocation7] sm:$0xff]
    %v143 = vld [vmem:[#allocation7 + $0x8] sm:$0xff]
    %v144 = vld [vmem:[%s4] sm:$0x1]
    %v146 = vlaneseq
    %v147 = vshrl.u32 %v146, 7
    %v148 = vsub.s32 0, %v147
    %v149 = vrot.slane %v144, %v148
    %vm151 = vcmask 130048
    %v153 = vsel %vm151, %v141, 0
    %155 = vmatprep.subr.mxu0 0.0
    %156 = vmatpush1.msra.mxu0 0.0
    %157 = vmatprep.subr.mxu0 0.0
    %158 = vmatpush1.msra.mxu0 0.0
    %159 = vmatprep.subr.mxu0 0.0
    %160 = vmatpush1.msra.mxu0 0.0
    %161 = vmatprep.subr.mxu0 0.0
    %162 = vmatpush1.msra.mxu0 0.0
    %163 = vmatprep.subr.mxu0 0.0
    %164 = vmatpush1.msra.mxu0 0.0
    %165 = vmatprep.subr.mxu0 0.0
    %166 = vmatpush1.msra.mxu0 0.0
    %167 = vmatprep.subr.mxu0 0.0
    %168 = vmatpush1.msra.mxu0 0.0
    %169 = vmatprep.subr.mxu0 0.0
    %170 = vmatpush1.msra.mxu0 0.0
    %171 = vmatprep.subr.mxu0 0.0
    %172 = vmatpush1.msra.mxu0 0.0
    %173 = vmatprep.subr.mxu0 0.0
    %174 = vmatpush1.msra.mxu0 0.0
    %175 = vmatprep.subr.mxu0 0.0
    %176 = vmatpush1.msra.mxu0 0.0
    %177 = vmatprep.subr.mxu0 0.0
    %178 = vmatpush1.msra.mxu0 0.0
    %179 = vmatprep.subr.mxu0 0.0
    %180 = vmatpush1.msra.mxu0 0.0
    %181 = vmatprep.subr.mxu0 0.0
    %182 = vmatpush1.msra.mxu0 0.0
    %183 = vmatprep.subr.mxu0 0.0
    %184 = vmatpush1.msra.mxu0 %v143
    %185 = vmatprep.subr.mxu0 0.0
    %186 = vmatpush1.msra.mxu0 %v142
    %187 = vmatprep.subr.mxu0 0.0
    %188 = vmatpush2.msra.mxu0 0.0
    %189 = vmatprep.subr.mxu0 0.0
    %190 = vmatpush2.msra.mxu0 0.0
    %191 = vmatprep.subr.mxu0 0.0
    %192 = vmatpush2.msra.mxu0 0.0
    %193 = vmatprep.subr.mxu0 0.0
    %194 = vmatpush2.msra.mxu0 0.0
    %195 = vmatprep.subr.mxu0 0.0
    %196 = vmatpush2.msra.mxu0 0.0
    %197 = vmatprep.subr.mxu0 0.0
    %198 = vmatpush2.msra.mxu0 0.0
    %199 = vmatprep.subr.mxu0 0.0
    %200 = vmatpush2.msra.mxu0 0.0
    %201 = vmatprep.subr.mxu0 0.0
    %202 = vmatpush2.msra.mxu0 0.0
    %203 = vmatprep.subr.mxu0 0.0
    %204 = vmatpush2.msra.mxu0 0.0
    %205 = vmatprep.subr.mxu0 0.0
    %206 = vmatpush2.msra.mxu0 0.0
    %207 = vmatprep.subr.mxu0 0.0
    %208 = vmatpush2.msra.mxu0 0.0
    %209 = vmatprep.subr.mxu0 0.0
    %210 = vmatpush2.msra.mxu0 0.0
    %211 = vmatprep.subr.mxu0 0.0
    %212 = vmatpush2.msra.mxu0 0.0
    %213 = vmatprep.subr.mxu0 0.0
    %214 = vmatpush2.msra.mxu0 0.0
    %215 = vmatprep.subr.mxu0 0.0
    %216 = vmatpush2.msra.mxu0 0.0
    %217 = vmatprep.subr.mxu0 0.0
    %218 = vmatpush2.msra.mxu0 0.0
    %219 = vmatprep.mubr.f32.mxu0 0.0
    %220 = vmatmul.mubr.f32.gmra.mxu0 %v153
    %v221 = vpop.f32.mrf.mxu0
    %v222 = vadd.f32 %v149, %v221
    %v223 = vpop.f32.mrf.mxu0
    %224 = vdwg.mxu0
    %v225 = vlaneseq
    %v226 = vand.u32 %v225, 127
    %vm227 = vcmp.lt.s32.totalorder %v226, 7
    %v228 = vsel %vm227, %v222, -1e+30
    %vm229 = vcmask 1041408
    %v230 = vsel %vm229, %v228, -inf
    %231 = vmax.xlane.f32.xlu0 %v230
    %v232 = vpop.xlane.xlu0 %231
    %v233 = vsub.f32 %v228, %v232
    %v234 = vmul.f32 %v233, 1.442695
    %v235 = vpow.pop %v234
    %v236 = vsel %vm229, %v235, 0.0
    %237 = vadd.xlane.f32.xlu0 %v236
    %v238 = vpop.xlane.xlu0 %237
    %v239 = vrcp.pop %v238
    %v240 = vmul.f32 %v235, %v239
    %241 = vst [vmem:[#allocation8] sm:$0x3] %v240
    // Predicated region
    $region34: #{classifier_forward.1} parent=1 // pred_check
      _
    $region35: #{classifier_forward.1} parent=1 // pred_check_branch
      %243 = sbr.rel (0) target = $region37
    $region36: #{classifier_forward.1} parent=1 // pred_region
      %s245 = ssub.s32 32, 32
      %246 = vsyncadd [#allocation4], %s245
      %s248 = sshll.u32 [#allocation8], 4
      %s249 = int_to_ptr.vmem [resolvable:$true] %s248
      %251 = dma.vmem_to_hbm [thread:$0]  %s249, 32, %s5, [#allocation4]
    $region37: #{classifier_forward.1} parent=1 // pred_fallthru
      _
    // Predicated region
    $region38: #{classifier_forward.1} parent=1 // pred_check
      _
    $region39: #{classifier_forward.1} parent=1 // pred_check_branch
      %253 = sbr.rel (0) target = $region41
    $region40: #{classifier_forward.1} parent=1 // pred_region
      %254 = dma.done [#allocation4], 32
    $region41: #{classifier_forward.1} parent=1 // pred_fallthru
      _
    %255 = vsyncpa [#allocation3], 1
    %256 = vsyncpa [#allocation6], 1
    %257 = vsyncpa [#allocation4], 1

</llo_original>
